<compile_context>
chip_gen: v7x
topology: tpu7x:2x2x1
jax: 0.10.0
libtpu: 0.0.40
codegen_flags: <defaults>
</compile_context>

<pallas_src>
import functools
from itertools import combinations

import numpy as np
import jax
import jax.numpy as jnp
from jax.experimental import pallas as pl
from jax.experimental.pallas import tpu as pltpu


_LANE = 128
_SUBLANE = 8
_TRIPLET_BLOCK = 128          # triplets processed per grid step
_VMEM_LIMIT = 48 * 1024 * 1024


def _round_up(x, m):
    return ((x + m - 1) // m) * m


def _next_pow2(x):
    x = max(int(x), 1)
    return 1 << (x - 1).bit_length()


# ----------------------------- Kernel 1: pairwise sq. distance --------------------------
def _distance_kernel(ei_ref, ej_ref, sqi_ref, sqj_ref, o_ref):
    # MXU Gram tile, contracting the feature dim of both row blocks directly
    # (no transpose materialized; inputs go to the MXU in their stored dtype,
    # only the accumulator is f32).
    # TODO(synk): optionally cast f32 inputs to bf16 here for 2-4x MXU throughput;
    # kept f32 to avoid perturbing the semi-hard mining band (0 < loss < margin).
    gram = jax.lax.dot_general(
        ei_ref[...],
        ej_ref[...],
        dimension_numbers=(((1,), (1,)), ((), ())),
        preferred_element_type=jnp.float32,
    )
    o_ref[...] = -2.0 * gram + sqi_ref[...] + sqj_ref[...]


def _choose_dist_tiling(n):
    """Adaptive (n_pad, tm, tn) so small batches don't pad up to 256x256 tiles."""
    n128 = _round_up(n, _LANE)
    if n128 <= 512:
        return n128, n128, n128           # single whole-array block, grid (1,1)
    n_pad = _round_up(n, 256)
    tm = 512 if n_pad % 512 == 0 else 256  # bigger TM halves ej restreaming
    return n_pad, tm, 256


def pairwise_distance_padded(e_pad, *, tm, tn):
    """e_pad: (N_pad, D_pad) with N_pad % tm == 0, N_pad % tn == 0, D_pad % 128 == 0."""
    n_pad, d_pad = e_pad.shape
    # Row squared norms via plain jnp (single fused XLA pass, no extra pallas_call).
    e32 = e_pad.astype(jnp.float32)
    sq = jnp.sum(e32 * e32, axis=1)
    sq_col = sq.reshape(n_pad, 1)
    sq_row = sq.reshape(1, n_pad)
    return pl.pallas_call(
        _distance_kernel,
        out_shape=jax.ShapeDtypeStruct((n_pad, n_pad), jnp.float32),
        grid_spec=pltpu.PrefetchScalarGridSpec(
            num_scalar_prefetch=0,
            grid=(n_pad // tm, n_pad // tn),
            in_specs=[
                pl.BlockSpec((tm, d_pad), lambda i, j: (i, 0)),
                pl.BlockSpec((tn, d_pad), lambda i, j: (j, 0)),
                pl.BlockSpec((tm, 1), lambda i, j: (i, 0)),
                pl.BlockSpec((1, tn), lambda i, j: (0, j)),
            ],
            out_specs=pl.BlockSpec((tm, tn), lambda i, j: (i, j)),
        ),
        compiler_params=pltpu.CompilerParams(
            dimension_semantics=("parallel", "parallel"),
            vmem_limit_bytes=_VMEM_LIMIT,
        ),
    )(e_pad, e_pad, sq_col, sq_row)


# ----------------------------- Kernel 2: triplet margin loss ----------------------------
def _triplet_block_kernel(tcount_ref, idx_ref, e_ref, o_ref, *, margin, tb):
    i = pl.program_id(0)
    idx = idx_ref[...]                                  # (TB, 3) int32
    e = e_ref[...].astype(jnp.float32)                  # (N_pad, D_pad), VMEM-resident
    n_pad = e.shape[0]

    # One-hot gather of anchor/positive/negative rows through the MXU.
    col = jax.lax.broadcasted_iota(jnp.int32, (tb, n_pad), 1)
    a_oh = (col == idx[:, 0:1]).astype(jnp.float32)
    p_oh = (col == idx[:, 1:2]).astype(jnp.float32)
    n_oh = (col == idx[:, 2:3]).astype(jnp.float32)
    a = jnp.dot(a_oh, e, preferred_element_type=jnp.float32)   # (TB, D_pad)
    p = jnp.dot(p_oh, e, preferred_element_type=jnp.float32)
    ng = jnp.dot(n_oh, e, preferred_element_type=jnp.float32)

    ap = jnp.sum((a - p) ** 2, axis=1, keepdims=True)   # (TB, 1)
    an = jnp.sum((a - ng) ** 2, axis=1, keepdims=True)  # (TB, 1)
    loss = jnp.maximum(ap - an + margin, 0.0)

    # Mask zero-padded triplets (each would otherwise contribute exactly `margin`).
    row = jax.lax.broadcasted_iota(jnp.int32, (tb, 1), 0) + i * tb
    valid = row < tcount_ref[0]
    o_ref[...] = jnp.where(valid, loss, jnp.zeros_like(loss))


def triplet_loss_sum(e_pad, triplets, margin):
    """e_pad: (N_pad, D_pad) padded embeddings; triplets: (T, 3) int array."""
    n_pad, d_pad = e_pad.shape
    t = int(triplets.shape[0])
    # Power-of-two bucketing -> grid size only changes at bucket boundaries
    # (limits Mosaic recompiles in a training loop); tcount masks the padding.
    t_bucket = max(_SUBLANE, _next_pow2(t))
    tb = min(_TRIPLET_BLOCK, t_bucket)

    idx = np.zeros((t_bucket, 3), dtype=np.int32)
    idx[:t] = np.asarray(triplets, dtype=np.int32)
    tcount = jnp.asarray([t], dtype=jnp.int32)

    kernel = functools.partial(_triplet_block_kernel, margin=float(margin), tb=tb)
    # TODO(synk): for very large N_pad * D_pad (embedding table > ~16 MiB) add an
    # inner row-block grid axis over e_pad instead of keeping it fully resident.
    losses = pl.pallas_call(
        kernel,
        out_shape=jax.ShapeDtypeStruct((t_bucket, 1), jnp.float32),
        grid_spec=pltpu.PrefetchScalarGridSpec(
            num_scalar_prefetch=1,
            grid=(t_bucket // tb,),
            in_specs=[
                pl.BlockSpec((tb, 3), lambda i, tc: (i, 0)),
                # Grid-invariant block: embeddings DMA'd once, resident in VMEM.
                pl.BlockSpec((n_pad, d_pad), lambda i, tc: (0, 0)),
            ],
            out_specs=pl.BlockSpec((tb, 1), lambda i, tc: (i, 0)),
        ),
        compiler_params=pltpu.CompilerParams(
            dimension_semantics=("parallel",),   # v7x: 2 TCs split the triplet blocks
            vmem_limit_bytes=_VMEM_LIMIT,
        ),
    )(tcount, jnp.asarray(idx), e_pad)
    return jnp.sum(losses)


# ----------------------------- Host-side semi-hard mining -------------------------------
# Faithful port of TripletLoss.get_triplets / semi_hard (ragged, data-dependent control
# flow + np.random.choice -> stays in numpy, exactly like the PyTorch module).
def _semi_hard(loss_values, margin):
    semi_hard_negatives = np.where(np.logical_and(loss_values < margin, loss_values > 0))[0]
    return np.random.choice(semi_hard_negatives) if len(semi_hard_negatives) > 0 else None


def get_triplets(dist, labels, margin):
    triplets = []
    for label in set(labels.tolist()):
        pos = labels == label
        pos_inds = np.where(pos)[0]
        if len(pos_inds) < 2:
            continue
        neg_ind = np.where(np.logical_not(pos))[0]
        anchor_positives = np.array(list(combinations(pos_inds, 2)))
        ap_distances = dist[anchor_positives[:, 0], anchor_positives[:, 1]]
        for anchor_positive, ap_distance in zip(anchor_positives, ap_distances):
            loss_values = ap_distance - dist[anchor_positive[0], neg_ind] + margin
            hard_negative = _semi_hard(loss_values, margin)
            if hard_negative is not None:
                triplets.append(
                    [int(anchor_positive[0]), int(anchor_positive[1]), int(neg_ind[hard_negative])]
                )
    return np.array(triplets, dtype=np.int32)


# ----------------------------- Module equivalent ----------------------------------------
class TripletLossPallas:
    def __init__(self, margin):
        self.margin = margin
        self.last_dist = None
        self.last_triplets = None

    def __call__(self, embeddings, labels):
        n, d = embeddings.shape
        d_pad = _round_up(d, _LANE)
        n_pad, tm, tn = _choose_dist_tiling(n)
        e_pad = jnp.zeros((n_pad, d_pad), embeddings.dtype).at[:n, :d].set(embeddings)

        # Distance matrix on-device (tiled Pallas kernel), sliced on device before the
        # host transfer; semi-hard mining on host like the PyTorch module.
        dist_dev = pairwise_distance_padded(e_pad, tm=tm, tn=tn)[:n, :n]
        dist = np.asarray(dist_dev)
        self.last_dist = dist
        labels_np = np.asarray(labels)
        triplets = get_triplets(dist, labels_np, self.margin)
        self.last_triplets = triplets
        if triplets.size == 0:
            # PyTorch path would index with an empty LongTensor; the sum is 0.
            return jnp.float32(0.0), 0

        loss = triplet_loss_sum(e_pad, triplets, self.margin)
        return loss, len(triplets)


# ----------------------------- Demo ------------------------------------------------------
if __name__ == "__main__":
    np.random.seed(0)  # deterministic semi-hard negative choice
    key = jax.random.PRNGKey(0)

    N, D = 16, 32
    margin = 100.0
    embeddings = jax.random.normal(key, (N, D), dtype=jnp.float32)
    labels = jnp.array([0, 0, 0, 0, 1, 1, 1, 1, 2, 2, 2, 2, 3, 3, 3, 3], dtype=jnp.int32)

    loss_fn = TripletLossPallas(margin)
    loss, n_triplets = loss_fn(embeddings, labels)
    loss = jax.block_until_ready(loss)

    # ---- pure-numpy reference checks over the same mined triplets ----
    e_np = np.asarray(embeddings, dtype=np.float32)
    sq = (e_np ** 2).sum(1)
    dist_ref = -2.0 * (e_np @ e_np.T) + sq[None, :] + sq[:, None]
    np.testing.assert_allclose(loss_fn.last_dist, dist_ref, rtol=2e-3, atol=2e-3)

    if n_triplets > 0:
        tri = loss_fn.last_triplets
        a, p, ng = e_np[tri[:, 0]], e_np[tri[:, 1]], e_np[tri[:, 2]]
        ref_loss = np.maximum(
            ((a - p) ** 2).sum(1) - ((a - ng) ** 2).sum(1) + margin, 0.0
        ).sum()
        np.testing.assert_allclose(float(loss), ref_loss, rtol=2e-3, atol=2e-3)

    print("KERNEL_OK")
</pallas_src>

<mosaic_0001>
module attributes {stable_mosaic.version = 11 : i64} {
  func.func @_distance_kernel(%arg0: i32, %arg1: i32, %arg2: memref<128x128xf32, #tpu.memory_space<vmem>>, %arg3: memref<128x128xf32, #tpu.memory_space<vmem>>, %arg4: memref<128x1xf32, #tpu.memory_space<vmem>>, %arg5: memref<1x128xf32, #tpu.memory_space<vmem>>, %arg6: memref<128x128xf32, #tpu.memory_space<vmem>>) attributes {dimension_semantics = [#tpu.dimension_semantics<parallel>, #tpu.dimension_semantics<parallel>], iteration_bounds = array<i64: 1, 1>, scalar_prefetch = 0 : i64, scratch_operands = 0 : i64, tpu.core_type = #tpu.core_type<tc>, window_params = [{transform_indices = @transform_0, window_bounds = array<i64: 128, 128>}, {transform_indices = @transform_1, window_bounds = array<i64: 128, 128>}, {transform_indices = @transform_2, window_bounds = array<i64: 128, 1>}, {transform_indices = @transform_3, window_bounds = array<i64: 1, 128>}, {transform_indices = @transform_4, window_bounds = array<i64: 128, 128>}]} {
    %c0 = arith.constant 0 : index
    %c0_0 = arith.constant 0 : index
    %0 = vector.load %arg2[%c0, %c0_0] : memref<128x128xf32, #tpu.memory_space<vmem>>, vector<128x128xf32>
    %c0_1 = arith.constant 0 : index
    %c0_2 = arith.constant 0 : index
    %1 = vector.load %arg3[%c0_1, %c0_2] : memref<128x128xf32, #tpu.memory_space<vmem>>, vector<128x128xf32>
    %cst = arith.constant dense<0.000000e+00> : vector<128x128xf32>
    %2 = tpu.matmul %0, %1, %cst {dimension_numbers = #tpu.dot_dimension_numbers<[1], [1], [0], [0], [0, 0, 1, 0], [], []>} : vector<128x128xf32>, vector<128x128xf32>, vector<128x128xf32> -> vector<128x128xf32>
    %cst_3 = arith.constant -2.000000e+00 : f32
    %3 = vector.broadcast %cst_3 : f32 to vector<128x128xf32>
    %4 = arith.mulf %3, %2 : vector<128x128xf32>
    %c0_4 = arith.constant 0 : index
    %c0_5 = arith.constant 0 : index
    %5 = vector.load %arg4[%c0_4, %c0_5] : memref<128x1xf32, #tpu.memory_space<vmem>>, vector<128x1xf32>
    %6 = vector.broadcast %5 : vector<128x1xf32> to vector<128x128xf32>
    %7 = arith.addf %4, %6 : vector<128x128xf32>
    %c0_6 = arith.constant 0 : index
    %c0_7 = arith.constant 0 : index
    %8 = vector.load %arg5[%c0_6, %c0_7] : memref<1x128xf32, #tpu.memory_space<vmem>>, vector<1x128xf32>
    %9 = vector.broadcast %8 : vector<1x128xf32> to vector<128x128xf32>
    %10 = arith.addf %7, %9 : vector<128x128xf32>
    %c0_8 = arith.constant 0 : index
    %c0_9 = arith.constant 0 : index
    %11 = vector.load %arg6[%c0_8, %c0_9] : memref<128x128xf32, #tpu.memory_space<vmem>>, vector<128x128xf32>
    tpu.vector_store %arg6[%c0_8, %c0_9], %10 {strides = array<i32>} : memref<128x128xf32, #tpu.memory_space<vmem>>, vector<128x128xf32>,
    return
  }
  func.func @transform_0(%arg0: i32, %arg1: i32) -> (i32, i32) {
    %c0_i32 = arith.constant 0 : i32
    %c0_i32_0 = arith.constant 0 : i32
    return %arg0, %c0_i32 : i32, i32
  }
  func.func @transform_1(%arg0: i32, %arg1: i32) -> (i32, i32) {
    %c0_i32 = arith.constant 0 : i32
    %c0_i32_0 = arith.constant 0 : i32
    return %arg1, %c0_i32 : i32, i32
  }
  func.func @transform_2(%arg0: i32, %arg1: i32) -> (i32, i32) {
    %c0_i32 = arith.constant 0 : i32
    %c0_i32_0 = arith.constant 0 : i32
    return %arg0, %c0_i32 : i32, i32
  }
  func.func @transform_3(%arg0: i32, %arg1: i32) -> (i32, i32) {
    %c0_i32 = arith.constant 0 : i32
    %c0_i32_0 = arith.constant 0 : i32
    return %c0_i32, %arg1 : i32, i32
  }
  func.func @transform_4(%arg0: i32, %arg1: i32) -> (i32, i32) {
    %c0_i32 = arith.constant 0 : i32
    return %arg0, %arg1 : i32, i32
  }
}

</mosaic_0001>

<llo_original>
// kernel: tpu_custom_call.1
$region0: #{tpu_custom_call.1}
  #allocation0 [shape = 'u32[]', space=smem, size = 0x4, offset = 0x4, fixed_abs, tag = 'smem constant byte address 0x4 - core index']
  #allocation1 [shape = 'u32[144,128]{1,0:T(1,128)}', space=vmem, size = 0x12000, scoped, tag = 'internal scratch']
  %s0 = inlined_call_operand.vmem [shape: f32[128,128], index: 0, kind: input, shape index: {}]
  %s1 = inlined_call_operand.hbm [shape: f32[128,128], index: 1, kind: input, shape index: {}]
  %s2 = inlined_call_operand.vmem [shape: f32[128,1], index: 2, kind: input, shape index: {}]
  %s3 = inlined_call_operand.vmem [shape: f32[1,128], index: 3, kind: input, shape index: {}]
  %s4 = inlined_call_operand.hbm [shape: f32[128,128], index: 4, kind: output, shape index: {}]
  %s5 = sld [smem:[#allocation0]]
  $region30: #{tpu_custom_call.1} parent=0
    _
  %s7 = ssub.s32 1, %s5
  %s8 = scalar_select 0, %s7, %s5
  $region1: #{tpu_custom_call.1} parent=0
    #allocation2 [shape = 'u8[65536]{0}', space=vmem, size = 0x10000, scoped, tag = 'input window, operand 1, single buffered']
    #allocation3 [shape = 's32[1]{0}', space=sflag, size = 0x4, scoped, tag = 'scoped memory for tpu_custom_call.1']
    #allocation4 [shape = 's32[1]{0}', space=sflag, size = 0x4, scoped, tag = 'scoped memory for tpu_custom_call.1']
    #allocation5 [shape = 'u8[65536]{0}', space=vmem, size = 0x10000, scoped, tag = 'output window, operand 0, single buffered']
    %9 = vsyncpa [#allocation3], 0
    %10 = vsyncpa [#allocation4], 0
    // Predicated region
    $region2: #{tpu_custom_call.1} parent=1 // pred_check
      _
    $region3: #{tpu_custom_call.1} parent=1 // pred_check_branch
      %12 = sbr.rel (0) target = $region5
    $region4: #{tpu_custom_call.1} parent=1 // pred_region
      _
    $region5: #{tpu_custom_call.1} parent=1 // pred_fallthru
      _
    // Predicated region
    $region6: #{tpu_custom_call.1} parent=1 // pred_check
      _
    $region7: #{tpu_custom_call.1} parent=1 // pred_check_branch
      %14 = sbr.rel (0) target = $region9
    $region8: #{tpu_custom_call.1} parent=1 // pred_region
      %s16 = ssub.s32 2048, 2048
      %17 = vsyncadd [#allocation3], %s16
      %s18 = sshll.u32 [#allocation2], 4
      %s19 = int_to_ptr.vmem [resolvable:$true] %s18
      %24 = dma.hbm_to_vmem [thread:$0]  %s1, 2048, %s19, [#allocation3], 128, 128, 8
    $region9: #{tpu_custom_call.1} parent=1 // pred_fallthru
      _
    // Predicated region
    $region10: #{tpu_custom_call.1} parent=1 // pred_check
      _
    $region11: #{tpu_custom_call.1} parent=1 // pred_check_branch
      %26 = sbr.rel (0) target = $region13
    $region12: #{tpu_custom_call.1} parent=1 // pred_region
      _
    $region13: #{tpu_custom_call.1} parent=1 // pred_fallthru
      _
    // Predicated region
    $region14: #{tpu_custom_call.1} parent=1 // pred_check
      _
    $region15: #{tpu_custom_call.1} parent=1 // pred_check_branch
      %28 = sbr.rel (0) target = $region17
    $region16: #{tpu_custom_call.1} parent=1 // pred_region
      _
    $region17: #{tpu_custom_call.1} parent=1 // pred_fallthru
      _
    // Predicated region
    $region18: #{tpu_custom_call.1} parent=1 // pred_check
      _
    $region19: #{tpu_custom_call.1} parent=1 // pred_check_branch
      %30 = sbr.rel (0) target = $region21
    $region20: #{tpu_custom_call.1} parent=1 // pred_region
      %31 = dma.done [#allocation3], 2048
    $region21: #{tpu_custom_call.1} parent=1 // pred_fallthru
      _
    %v32 = vld [vmem:[%s0] sm:$0xff]
    %v33 = vld [vmem:[%s0 + $0x8] sm:$0xff]
    %v34 = vld [vmem:[%s0 + $0x10] sm:$0xff]
    %v35 = vld [vmem:[%s0 + $0x18] sm:$0xff]
    %v36 = vld [vmem:[%s0 + $0x20] sm:$0xff]
    %v37 = vld [vmem:[%s0 + $0x28] sm:$0xff]
    %v38 = vld [vmem:[%s0 + $0x30] sm:$0xff]
    %v39 = vld [vmem:[%s0 + $0x38] sm:$0xff]
    %v40 = vld [vmem:[%s0 + $0x40] sm:$0xff]
    %v41 = vld [vmem:[%s0 + $0x48] sm:$0xff]
    %v42 = vld [vmem:[%s0 + $0x50] sm:$0xff]
    %v43 = vld [vmem:[%s0 + $0x58] sm:$0xff]
    %v44 = vld [vmem:[%s0 + $0x60] sm:$0xff]
    %v45 = vld [vmem:[%s0 + $0x68] sm:$0xff]
    %v46 = vld [vmem:[%s0 + $0x70] sm:$0xff]
    %v47 = vld [vmem:[%s0 + $0x78] sm:$0xff]
    %v48 = vld [vmem:[#allocation2] sm:$0xff]
    %v49 = vld [vmem:[#allocation2 + $0x8] sm:$0xff]
    %v50 = vld [vmem:[#allocation2 + $0x10] sm:$0xff]
    %v51 = vld [vmem:[#allocation2 + $0x18] sm:$0xff]
    %v52 = vld [vmem:[#allocation2 + $0x20] sm:$0xff]
    %v53 = vld [vmem:[#allocation2 + $0x28] sm:$0xff]
    %v54 = vld [vmem:[#allocation2 + $0x30] sm:$0xff]
    %v55 = vld [vmem:[#allocation2 + $0x38] sm:$0xff]
    %v56 = vld [vmem:[#allocation2 + $0x40] sm:$0xff]
    %v57 = vld [vmem:[#allocation2 + $0x48] sm:$0xff]
    %v58 = vld [vmem:[#allocation2 + $0x50] sm:$0xff]
    %v59 = vld [vmem:[#allocation2 + $0x58] sm:$0xff]
    %v60 = vld [vmem:[#allocation2 + $0x60] sm:$0xff]
    %v61 = vld [vmem:[#allocation2 + $0x68] sm:$0xff]
    %v62 = vld [vmem:[#allocation2 + $0x70] sm:$0xff]
    %v63 = vld [vmem:[#allocation2 + $0x78] sm:$0xff]
    %64 = vmatprep.subr.mxu0 0.0
    %65 = vmatpush1.xpose.msra.mxu0 %v48
    %66 = vmatprep.subr.mxu0 0.0
    %67 = vmatpush1.xpose.msra.mxu0 %v49
    %68 = vmatprep.subr.mxu0 0.0
    %69 = vmatpush1.xpose.msra.mxu0 %v50
    %70 = vmatprep.subr.mxu0 0.0
    %71 = vmatpush1.xpose.msra.mxu0 %v51
    %72 = vmatprep.subr.mxu0 0.0
    %73 = vmatpush1.xpose.msra.mxu0 %v52
    %74 = vmatprep.subr.mxu0 0.0
    %75 = vmatpush1.xpose.msra.mxu0 %v53
    %76 = vmatprep.subr.mxu0 0.0
    %77 = vmatpush1.xpose.msra.mxu0 %v54
    %78 = vmatprep.subr.mxu0 0.0
    %79 = vmatpush1.xpose.msra.mxu0 %v55
    %80 = vmatprep.subr.mxu0 0.0
    %81 = vmatpush1.xpose.msra.mxu0 %v56
    %82 = vmatprep.subr.mxu0 0.0
    %83 = vmatpush1.xpose.msra.mxu0 %v57
    %84 = vmatprep.subr.mxu0 0.0
    %85 = vmatpush1.xpose.msra.mxu0 %v58
    %86 = vmatprep.subr.mxu0 0.0
    %87 = vmatpush1.xpose.msra.mxu0 %v59
    %88 = vmatprep.subr.mxu0 0.0
    %89 = vmatpush1.xpose.msra.mxu0 %v60
    %90 = vmatprep.subr.mxu0 0.0
    %91 = vmatpush1.xpose.msra.mxu0 %v61
    %92 = vmatprep.subr.mxu0 0.0
    %93 = vmatpush1.xpose.msra.mxu0 %v62
    %94 = vmatprep.subr.mxu0 0.0
    %95 = vmatpush1.xpose.msra.mxu0 %v63
    %96 = vmatprep.subr.mxu0 0.0
    %97 = vmatpush1.xpose.msra.mxu0 0.0
    %98 = vmatprep.subr.mxu0 0.0
    %99 = vmatpush1.xpose.msra.mxu0 0.0
    %100 = vmatprep.subr.mxu0 0.0
    %101 = vmatpush1.xpose.msra.mxu0 0.0
    %102 = vmatprep.subr.mxu0 0.0
    %103 = vmatpush1.xpose.msra.mxu0 0.0
    %104 = vmatprep.subr.mxu0 0.0
    %105 = vmatpush1.xpose.msra.mxu0 0.0
    %106 = vmatprep.subr.mxu0 0.0
    %107 = vmatpush1.xpose.msra.mxu0 0.0
    %108 = vmatprep.subr.mxu0 0.0
    %109 = vmatpush1.xpose.msra.mxu0 0.0
    %110 = vmatprep.subr.mxu0 0.0
    %111 = vmatpush1.xpose.msra.mxu0 0.0
    %112 = vmatprep.subr.mxu0 0.0
    %113 = vmatpush1.xpose.msra.mxu0 0.0
    %114 = vmatprep.subr.mxu0 0.0
    %115 = vmatpush1.xpose.msra.mxu0 0.0
    %116 = vmatprep.subr.mxu0 0.0
    %117 = vmatpush1.xpose.msra.mxu0 0.0
    %118 = vmatprep.subr.mxu0 0.0
    %119 = vmatpush1.xpose.msra.mxu0 0.0
    %120 = vmatprep.subr.mxu0 0.0
    %121 = vmatpush1.xpose.msra.mxu0 0.0
    %122 = vmatprep.subr.mxu0 0.0
    %123 = vmatpush1.xpose.msra.mxu0 0.0
    %124 = vmatprep.subr.mxu0 0.0
    %125 = vmatpush1.xpose.msra.mxu0 0.0
    %126 = vmatprep.subr.mxu0 0.0
    %127 = vmatpush1.xpose.msra.mxu0 0.0
    %128 = vmatprep.mubr.f32.mxu0 0.0
    %129 = vmatmul.mubr.f32.gmra.mrb[0].mxu0 %v32
    %v130 = vpop.f32.mrb[0].mxu0
    %v131 = vadd.f32 0.0, %v130
    %v132 = vpop.f32.mrb[0].mxu0
    %133 = vmatprep.mubr.f32.mxu0 0.0
    %134 = vmatmul.mubr.f32.gmra.mrb[0].mxu0 %v33
    %v135 = vpop.f32.mrb[0].mxu0
    %v136 = vadd.f32 0.0, %v135
    %v137 = vpop.f32.mrb[0].mxu0
    %138 = vmatprep.mubr.f32.mxu0 0.0
    %139 = vmatmul.mubr.f32.gmra.mrb[0].mxu0 %v34
    %v140 = vpop.f32.mrb[0].mxu0
    %v141 = vadd.f32 0.0, %v140
    %v142 = vpop.f32.mrb[0].mxu0
    %143 = vmatprep.mubr.f32.mxu0 0.0
    %144 = vmatmul.mubr.f32.gmra.mrb[0].mxu0 %v35
    %v145 = vpop.f32.mrb[0].mxu0
    %v146 = vadd.f32 0.0, %v145
    %v147 = vpop.f32.mrb[0].mxu0
    %148 = vmatprep.mubr.f32.mxu0 0.0
    %149 = vmatmul.mubr.f32.gmra.mrb[0].mxu0 %v36
    %v150 = vpop.f32.mrb[0].mxu0
    %v151 = vadd.f32 0.0, %v150
    %v152 = vpop.f32.mrb[0].mxu0
    %153 = vmatprep.mubr.f32.mxu0 0.0
    %154 = vmatmul.mubr.f32.gmra.mrb[0].mxu0 %v37
    %v155 = vpop.f32.mrb[0].mxu0
    %v156 = vadd.f32 0.0, %v155
    %v157 = vpop.f32.mrb[0].mxu0
    %158 = vmatprep.mubr.f32.mxu0 0.0
    %159 = vmatmul.mubr.f32.gmra.mrb[0].mxu0 %v38
    %v160 = vpop.f32.mrb[0].mxu0
    %v161 = vadd.f32 0.0, %v160
    %v162 = vpop.f32.mrb[0].mxu0
    %163 = vmatprep.mubr.f32.mxu0 0.0
    %164 = vmatmul.mubr.f32.gmra.mrb[0].mxu0 %v39
    %v165 = vpop.f32.mrb[0].mxu0
    %v166 = vadd.f32 0.0, %v165
    %v167 = vpop.f32.mrb[0].mxu0
    %168 = vmatprep.mubr.f32.mxu0 0.0
    %169 = vmatmul.mubr.f32.gmra.mrb[0].mxu0 %v40
    %v170 = vpop.f32.mrb[0].mxu0
    %v171 = vadd.f32 0.0, %v170
    %v172 = vpop.f32.mrb[0].mxu0
    %173 = vmatprep.mubr.f32.mxu0 0.0
    %174 = vmatmul.mubr.f32.gmra.mrb[0].mxu0 %v41
    %v175 = vpop.f32.mrb[0].mxu0
    %v176 = vadd.f32 0.0, %v175
    %v177 = vpop.f32.mrb[0].mxu0
    %178 = vmatprep.mubr.f32.mxu0 0.0
    %179 = vmatmul.mubr.f32.gmra.mrb[0].mxu0 %v42
    %v180 = vpop.f32.mrb[0].mxu0
    %v181 = vadd.f32 0.0, %v180
    %v182 = vpop.f32.mrb[0].mxu0
    %183 = vmatprep.mubr.f32.mxu0 0.0
    %184 = vmatmul.mubr.f32.gmra.mrb[0].mxu0 %v43
    %v185 = vpop.f32.mrb[0].mxu0
    %v186 = vadd.f32 0.0, %v185
    %v187 = vpop.f32.mrb[0].mxu0
    %188 = vmatprep.mubr.f32.mxu0 0.0
    %189 = vmatmul.mubr.f32.gmra.mrb[0].mxu0 %v44
    %v190 = vpop.f32.mrb[0].mxu0
    %v191 = vadd.f32 0.0, %v190
    %v192 = vpop.f32.mrb[0].mxu0
    %193 = vmatprep.mubr.f32.mxu0 0.0
    %194 = vmatmul.mubr.f32.gmra.mrb[0].mxu0 %v45
    %v195 = vpop.f32.mrb[0].mxu0
    %v196 = vadd.f32 0.0, %v195
    %v197 = vpop.f32.mrb[0].mxu0
    %198 = vmatprep.mubr.f32.mxu0 0.0
    %199 = vmatmul.mubr.f32.gmra.mrb[0].mxu0 %v46
    %v200 = vpop.f32.mrb[0].mxu0
    %v201 = vadd.f32 0.0, %v200
    %v202 = vpop.f32.mrb[0].mxu0
    %203 = vmatprep.mubr.f32.mxu0 0.0
    %204 = vmatmul.mubr.f32.gmra.mrb[0].mxu0 %v47
    %v205 = vpop.f32.mrb[0].mxu0
    %v206 = vadd.f32 0.0, %v205
    %v207 = vpop.f32.mrb[0].mxu0
    %208 = vdwg.mxu0
    %v209 = vmul.f32 %v131, -2.0
    %v210 = vmul.f32 %v136, -2.0
    %v211 = vmul.f32 %v141, -2.0
    %v212 = vmul.f32 %v146, -2.0
    %v213 = vmul.f32 %v151, -2.0
    %v214 = vmul.f32 %v156, -2.0
    %v215 = vmul.f32 %v161, -2.0
    %v216 = vmul.f32 %v166, -2.0
    %v217 = vmul.f32 %v171, -2.0
    %v218 = vmul.f32 %v176, -2.0
    %v219 = vmul.f32 %v181, -2.0
    %v220 = vmul.f32 %v186, -2.0
    %v221 = vmul.f32 %v191, -2.0
    %v222 = vmul.f32 %v196, -2.0
    %v223 = vmul.f32 %v201, -2.0
    %v224 = vmul.f32 %v206, -2.0
    %v225 = vld [vmem:[%s2] sm:$0xff]
    %v226 = vld [vmem:[%s2 + $0x8] sm:$0xff]
    %v227 = vld [vmem:[%s2 + $0x10] sm:$0xff]
    %v228 = vld [vmem:[%s2 + $0x18] sm:$0xff]
    %v229 = vld [vmem:[%s2 + $0x20] sm:$0xff]
    %v230 = vld [vmem:[%s2 + $0x28] sm:$0xff]
    %v231 = vld [vmem:[%s2 + $0x30] sm:$0xff]
    %v232 = vld [vmem:[%s2 + $0x38] sm:$0xff]
    %v233 = vld [vmem:[%s2 + $0x40] sm:$0xff]
    %v234 = vld [vmem:[%s2 + $0x48] sm:$0xff]
    %v235 = vld [vmem:[%s2 + $0x50] sm:$0xff]
    %v236 = vld [vmem:[%s2 + $0x58] sm:$0xff]
    %v237 = vld [vmem:[%s2 + $0x60] sm:$0xff]
    %v238 = vld [vmem:[%s2 + $0x68] sm:$0xff]
    %v239 = vld [vmem:[%s2 + $0x70] sm:$0xff]
    %v240 = vld [vmem:[%s2 + $0x78] sm:$0xff]
    %242 = vset.pattern.permute.xlu0 0
    %243 = vperm.xlu0 %242, %v225
    %v244 = vpop.permute.xlu0 %243
    %247 = vset.pattern.permute.xlu0 0
    %248 = vperm.xlu0 %247, %v226
    %v249 = vpop.permute.xlu0 %248
    %252 = vset.pattern.permute.xlu0 0
    %253 = vperm.xlu0 %252, %v227
    %v254 = vpop.permute.xlu0 %253
    %257 = vset.pattern.permute.xlu0 0
    %258 = vperm.xlu0 %257, %v228
    %v259 = vpop.permute.xlu0 %258
    %262 = vset.pattern.permute.xlu0 0
    %263 = vperm.xlu0 %262, %v229
    %v264 = vpop.permute.xlu0 %263
    %267 = vset.pattern.permute.xlu0 0
    %268 = vperm.xlu0 %267, %v230
    %v269 = vpop.permute.xlu0 %268
    %272 = vset.pattern.permute.xlu0 0
    %273 = vperm.xlu0 %272, %v231
    %v274 = vpop.permute.xlu0 %273
    %277 = vset.pattern.permute.xlu0 0
    %278 = vperm.xlu0 %277, %v232
    %v279 = vpop.permute.xlu0 %278
    %282 = vset.pattern.permute.xlu0 0
    %283 = vperm.xlu0 %282, %v233
    %v284 = vpop.permute.xlu0 %283
    %287 = vset.pattern.permute.xlu0 0
    %288 = vperm.xlu0 %287, %v234
    %v289 = vpop.permute.xlu0 %288
    %292 = vset.pattern.permute.xlu0 0
    %293 = vperm.xlu0 %292, %v235
    %v294 = vpop.permute.xlu0 %293
    %297 = vset.pattern.permute.xlu0 0
    %298 = vperm.xlu0 %297, %v236
    %v299 = vpop.permute.xlu0 %298
    %302 = vset.pattern.permute.xlu0 0
    %303 = vperm.xlu0 %302, %v237
    %v304 = vpop.permute.xlu0 %303
    %307 = vset.pattern.permute.xlu0 0
    %308 = vperm.xlu0 %307, %v238
    %v309 = vpop.permute.xlu0 %308
    %312 = vset.pattern.permute.xlu0 0
    %313 = vperm.xlu0 %312, %v239
    %v314 = vpop.permute.xlu0 %313
    %317 = vset.pattern.permute.xlu0 0
    %318 = vperm.xlu0 %317, %v240
    %v319 = vpop.permute.xlu0 %318
    %v321 = vadd.f32 %v209, %v244
    %v322 = vadd.f32 %v210, %v249
    %v323 = vadd.f32 %v211, %v254
    %v324 = vadd.f32 %v212, %v259
    %v325 = vadd.f32 %v213, %v264
    %v326 = vadd.f32 %v214, %v269
    %v327 = vadd.f32 %v215, %v274
    %v328 = vadd.f32 %v216, %v279
    %v329 = vadd.f32 %v217, %v284
    %v330 = vadd.f32 %v218, %v289
    %v331 = vadd.f32 %v219, %v294
    %v332 = vadd.f32 %v220, %v299
    %v333 = vadd.f32 %v221, %v304
    %v334 = vadd.f32 %v222, %v309
    %v335 = vadd.f32 %v223, %v314
    %v336 = vadd.f32 %v224, %v319
    %v337 = vld [vmem:[%s3] sm:$0x1]
    %v339 = vlaneseq
    %v340 = vshrl.u32 %v339, 7
    %v341 = vsub.s32 0, %v340
    %v342 = vrot.slane %v337, %v341
    %v344 = vadd.f32 %v321, %v342
    %v345 = vadd.f32 %v322, %v342
    %v346 = vadd.f32 %v323, %v342
    %v347 = vadd.f32 %v324, %v342
    %v348 = vadd.f32 %v325, %v342
    %v349 = vadd.f32 %v326, %v342
    %v350 = vadd.f32 %v327, %v342
    %v351 = vadd.f32 %v328, %v342
    %v352 = vadd.f32 %v329, %v342
    %v353 = vadd.f32 %v330, %v342
    %v354 = vadd.f32 %v331, %v342
    %v355 = vadd.f32 %v332, %v342
    %v356 = vadd.f32 %v333, %v342
    %v357 = vadd.f32 %v334, %v342
    %v358 = vadd.f32 %v335, %v342
    %v359 = vadd.f32 %v336, %v342
    %360 = vst [vmem:[#allocation5] sm:$0xff] %v344
    %361 = vst [vmem:[#allocation5 + $0x8] sm:$0xff] %v345
    %362 = vst [vmem:[#allocation5 + $0x10] sm:$0xff] %v346
    %363 = vst [vmem:[#allocation5 + $0x18] sm:$0xff] %v347
    %364 = vst [vmem:[#allocation5 + $0x20] sm:$0xff] %v348
    %365 = vst [vmem:[#allocation5 + $0x28] sm:$0xff] %v349
    %366 = vst [vmem:[#allocation5 + $0x30] sm:$0xff] %v350
    %367 = vst [vmem:[#allocation5 + $0x38] sm:$0xff] %v351
    %368 = vst [vmem:[#allocation5 + $0x40] sm:$0xff] %v352
    %369 = vst [vmem:[#allocation5 + $0x48] sm:$0xff] %v353
    %370 = vst [vmem:[#allocation5 + $0x50] sm:$0xff] %v354
    %371 = vst [vmem:[#allocation5 + $0x58] sm:$0xff] %v355
    %372 = vst [vmem:[#allocation5 + $0x60] sm:$0xff] %v356
    %373 = vst [vmem:[#allocation5 + $0x68] sm:$0xff] %v357
    %374 = vst [vmem:[#allocation5 + $0x70] sm:$0xff] %v358
    %375 = vst [vmem:[#allocation5 + $0x78] sm:$0xff] %v359
    // Predicated region
    $region22: #{tpu_custom_call.1} parent=1 // pred_check
      _
    $region23: #{tpu_custom_call.1} parent=1 // pred_check_branch
      %377 = sbr.rel (0) target = $region25
    $region24: #{tpu_custom_call.1} parent=1 // pred_region
      %s379 = ssub.s32 2048, 2048
      %380 = vsyncadd [#allocation4], %s379
      %s381 = sshll.u32 [#allocation5], 4
      %s382 = int_to_ptr.vmem [resolvable:$true] %s381
      %387 = dma.vmem_to_hbm [thread:$0]  %s382, 2048, %s4, [#allocation4], 128, 128, 8
    $region25: #{tpu_custom_call.1} parent=1 // pred_fallthru
      _
    // Predicated region
    $region26: #{tpu_custom_call.1} parent=1 // pred_check
      _
    $region27: #{tpu_custom_call.1} parent=1 // pred_check_branch
      %389 = sbr.rel (0) target = $region29
    $region28: #{tpu_custom_call.1} parent=1 // pred_region
      %390 = dma.done [#allocation4], 2048
    $region29: #{tpu_custom_call.1} parent=1 // pred_fallthru
      _
    %391 = vsyncpa [#allocation3], 1
    %392 = vsyncpa [#allocation4], 1

</llo_original>
